<compile_context>
chip_gen: v7x
topology: tpu7x:2x2x1
jax: 0.10.0
libtpu: 0.0.40
codegen_flags: <defaults>
</compile_context>

<pallas_src>
import functools
import math

import jax
import jax.numpy as jnp
from jax.experimental import pallas as pl
from jax.experimental.pallas import tpu as pltpu

LANES = 128
SUBLANES = 8


def _min_row_align(dtype):
    """Minimum second-to-last block dim for Mosaic given dtype packing."""
    size = jnp.dtype(dtype).itemsize
    if size >= 4:
        return 8
    if size == 2:
        return 16
    return 32


def _detect_generation():
    try:
        kind = jax.devices()[0].device_kind.lower()
    except Exception:
        return None
    for gen in ("v7", "v6", "v5", "v4"):
        if gen in kind:
            return gen
    return None


def _pixel_loss_kernel(sr_ref, hr_ref, out_ref, *, mode, n_rows, tile_rows,
                       steps, masked):
    # Grid = (core, step); "step" is the reduction axis (last, arbitrary).
    c = pl.program_id(0)
    i = pl.program_id(1)

    @pl.when(i == 0)
    def _():
        out_ref[...] = jnp.zeros_like(out_ref)

    def accumulate(mask_rows):
        d = sr_ref[...].astype(jnp.float32) - hr_ref[...].astype(jnp.float32)
        val = d * d if mode == "MSE" else jnp.abs(d)
        if mask_rows:
            # Only the final partial tile pays for the iota + select.
            t = c * steps + i
            row = (jax.lax.broadcasted_iota(jnp.int32, val.shape, 0)
                   + t * tile_rows)
            val = jnp.where(row < n_rows, val, jnp.float32(0.0))
        # Fold the tile into one (8,128) vreg-shaped accumulator: VPU adds only.
        out_ref[...] += jnp.sum(val.reshape(-1, SUBLANES, LANES), axis=0)

    if not masked:
        accumulate(False)
    else:
        t = c * steps + i
        lo = t * tile_rows

        @pl.when(lo + tile_rows <= n_rows)           # fully in-bounds: fast path
        def _():
            accumulate(False)

        @pl.when(jnp.logical_and(lo < n_rows, lo + tile_rows > n_rows))
        def _():                                     # final partial tile
            accumulate(True)
        # Clamped duplicate tiles (lo >= n_rows) skip accumulation entirely.


def _plain_sum(a, b, mode):
    d = a.astype(jnp.float32) - b.astype(jnp.float32)
    return jnp.sum(d * d) if mode == "MSE" else jnp.sum(jnp.abs(d))


def pixel_loss(sr, hr, mode="MSE", weight=1.0, tile_rows=None, num_cores=None):
    """PixelLoss.forward: mean-reduced MSE/L1(sr, hr) * weight."""
    if mode not in ("MSE", "L1"):
        raise ValueError("Unsupported mode: choose 'MSE' or 'L1'")
    assert sr.shape == hr.shape, "sr and hr must have the same shape"

    n_elems = math.prod(sr.shape)
    scale = jnp.float32(float(weight) / float(n_elems))

    row_align = max(_min_row_align(sr.dtype), _min_row_align(hr.dtype))
    n_rows = n_elems // LANES
    if n_rows < row_align:
        # Tiny input: not worth a kernel launch.
        return _plain_sum(sr.reshape(-1), hr.reshape(-1), mode) * scale

    gen = _detect_generation()
    if num_cores is None:
        num_cores = 2 if gen == "v7" else 1          # 2 TCs only on v7x
    if tile_rows is None:
        # 2 MiB f32 blocks on v7x (amortize ~0.35us/step vs 3.2 TB/s HBM),
        # 1 MiB elsewhere (safe inside v5e's 16 MiB scoped-VMEM default).
        tile_rows = 4096 if gen == "v7" else 2048

    sr_flat = sr.reshape(-1)
    hr_flat = hr.reshape(-1)
    n_main = n_rows * LANES
    if n_main == n_elems:
        # Common case: contiguous reshape only, no extra HBM traffic.
        sr2d = sr_flat.reshape(n_rows, LANES)
        hr2d = hr_flat.reshape(n_rows, LANES)
        tail = jnp.float32(0.0)
    else:
        # TODO(synk): rare non-128-divisible path still materializes a sliced
        # copy; switch to a 1-D BlockSpec + in-kernel reshape if it gets hot.
        sr2d = jax.lax.slice(sr_flat, (0,), (n_main,)).reshape(n_rows, LANES)
        hr2d = jax.lax.slice(hr_flat, (0,), (n_main,)).reshape(n_rows, LANES)
        tail = _plain_sum(sr_flat[n_main:], hr_flat[n_main:], mode)

    # Tile sizing: multiple of the dtype's minimum sublane tile, capped by the
    # array row count.
    tile_eff = min(int(tile_rows), n_rows)
    tile_eff -= tile_eff % row_align
    num_tiles = pl.cdiv(n_rows, tile_eff)

    nc = max(1, min(int(num_cores), num_tiles))      # core-parallel axis (v7x)
    steps = pl.cdiv(num_tiles, nc)
    virtual_tiles = nc * steps
    masked = (virtual_tiles * tile_eff) != n_rows

    if virtual_tiles > num_tiles:
        # Clamp so the DMA never indexes past the array; the kernel skips the
        # duplicated tiles' accumulation via pl.when.
        def tile_index(c, i):
            return (jnp.minimum(c * steps + i, num_tiles - 1), 0)
    else:
        def tile_index(c, i):
            return (c * steps + i, 0)

    kernel = functools.partial(
        _pixel_loss_kernel, mode=mode, n_rows=n_rows, tile_rows=tile_eff,
        steps=steps, masked=masked)

    bytes_in = n_main * (sr.dtype.itemsize + hr.dtype.itemsize)
    cost = pl.CostEstimate(flops=3 * n_main, transcendentals=0,
                           bytes_accessed=bytes_in + nc * SUBLANES * LANES * 4)

    vmem_limit = (24 << 20) if gen in ("v5", "v6", "v7") else None

    partials = pl.pallas_call(
        kernel,
        out_shape=jax.ShapeDtypeStruct((nc * SUBLANES, LANES), jnp.float32),
        grid_spec=pltpu.PrefetchScalarGridSpec(
            num_scalar_prefetch=0,
            grid=(nc, steps),
            in_specs=[
                pl.BlockSpec((tile_eff, LANES), tile_index),
                pl.BlockSpec((tile_eff, LANES), tile_index),
            ],
            out_specs=pl.BlockSpec((SUBLANES, LANES), lambda c, i: (c, 0)),
        ),
        compiler_params=pltpu.CompilerParams(
            dimension_semantics=("parallel", "arbitrary"),
            vmem_limit_bytes=vmem_limit),
        cost_estimate=cost,
    )(sr2d, hr2d)

    total = jnp.sum(partials) + tail
    return total * scale


if __name__ == "__main__":
    key = jax.random.PRNGKey(0)
    k1, k2, k3, k4, k5, k6 = jax.random.split(key, 6)
    weight = 1.0

    # Primary shape: NCHW (2, 4, 16, 16) f32 — single tile, unmasked hot path.
    shape = (2, 4, 16, 16)
    sr = jax.random.normal(k1, shape, dtype=jnp.float32)
    hr = jax.random.normal(k2, shape, dtype=jnp.float32)

    loss_mse = pixel_loss(sr, hr, mode="MSE", weight=weight)
    jax.block_until_ready(loss_mse)
    ref_mse = jnp.mean((sr - hr) ** 2) * weight
    assert jnp.allclose(loss_mse, ref_mse, rtol=1e-5, atol=1e-6), (
        loss_mse, ref_mse)

    loss_l1 = pixel_loss(sr, hr, mode="L1", weight=weight)
    jax.block_until_ready(loss_l1)
    ref_l1 = jnp.mean(jnp.abs(sr - hr)) * weight
    assert jnp.allclose(loss_l1, ref_l1, rtol=1e-5, atol=1e-6), (
        loss_l1, ref_l1)

    # Ragged row count (75 rows, 72-row tile) — exercises the masked last tile.
    shape2 = (2, 3, 40, 40)
    sr2 = jax.random.normal(k3, shape2, dtype=jnp.float32)
    hr2 = jax.random.normal(k4, shape2, dtype=jnp.float32)
    loss2 = pixel_loss(sr2, hr2, mode="MSE", weight=0.5)
    jax.block_until_ready(loss2)
    ref2 = jnp.mean((sr2 - hr2) ** 2) * 0.5
    assert jnp.allclose(loss2, ref2, rtol=1e-5, atol=1e-6), (loss2, ref2)

    # bf16 inputs stay bf16 in HBM (halved traffic); kernel upcasts in-register.
    shape3 = (2, 4, 32, 32)
    sr3 = jax.random.normal(k5, shape3, dtype=jnp.bfloat16)
    hr3 = jax.random.normal(k6, shape3, dtype=jnp.bfloat16)
    loss3 = pixel_loss(sr3, hr3, mode="L1", weight=2.0)
    jax.block_until_ready(loss3)
    d3 = sr3.astype(jnp.float32) - hr3.astype(jnp.float32)
    ref3 = jnp.mean(jnp.abs(d3)) * 2.0
    assert jnp.allclose(loss3, ref3, rtol=1e-5, atol=1e-6), (loss3, ref3)

    print("KERNEL_OK")
</pallas_src>

<mosaic_0001>
module attributes {stable_mosaic.version = 11 : i64} {
  func.func @_pixel_loss_kernel(%arg0: i32, %arg1: i32, %arg2: memref<16x128xf32, #tpu.memory_space<vmem>>, %arg3: memref<16x128xf32, #tpu.memory_space<vmem>>, %arg4: memref<8x128xf32, #tpu.memory_space<vmem>>) attributes {dimension_semantics = [#tpu.dimension_semantics<parallel>, #tpu.dimension_semantics<arbitrary>], iteration_bounds = array<i64: 1, 1>, scalar_prefetch = 0 : i64, scratch_operands = 0 : i64, tpu.core_type = #tpu.core_type<tc>, window_params = [{transform_indices = @transform_0, window_bounds = array<i64: 16, 128>}, {transform_indices = @transform_1, window_bounds = array<i64: 16, 128>}, {transform_indices = @transform_2, window_bounds = array<i64: 8, 128>}]} {
    %c0_i32 = arith.constant 0 : i32
    %0 = arith.cmpi eq, %arg1, %c0_i32 : i32
    %1 = arith.extui %0 : i1 to i32
    %c0_i32_0 = arith.constant 0 : i32
    %2 = arith.cmpi ne, %1, %c0_i32_0 : i32
    scf.if %2 {
      %cst_8 = arith.constant 0.000000e+00 : f32
      %12 = vector.broadcast %cst_8 : f32 to vector<8x128xf32>
      %c0_9 = arith.constant 0 : index
      %c0_10 = arith.constant 0 : index
      %13 = vector.load %arg4[%c0_9, %c0_10] : memref<8x128xf32, #tpu.memory_space<vmem>>, vector<8x128xf32>
      tpu.vector_store %arg4[%c0_9, %c0_10], %12 {strides = array<i32>} : memref<8x128xf32, #tpu.memory_space<vmem>>, vector<8x128xf32>,
    } else {
    }
    %c0 = arith.constant 0 : index
    %c0_1 = arith.constant 0 : index
    %3 = vector.load %arg2[%c0, %c0_1] : memref<16x128xf32, #tpu.memory_space<vmem>>, vector<16x128xf32>
    %c0_2 = arith.constant 0 : index
    %c0_3 = arith.constant 0 : index
    %4 = vector.load %arg3[%c0_2, %c0_3] : memref<16x128xf32, #tpu.memory_space<vmem>>, vector<16x128xf32>
    %5 = arith.subf %3, %4 : vector<16x128xf32>
    %6 = arith.mulf %5, %5 : vector<16x128xf32>
    %c0_4 = arith.constant 0 : index
    %c0_5 = arith.constant 0 : index
    %7 = vector.load %arg4[%c0_4, %c0_5] : memref<8x128xf32, #tpu.memory_space<vmem>>, vector<8x128xf32>
    %8 = vector.shape_cast %6 : vector<16x128xf32> to vector<2x8x128xf32>
    %cst = arith.constant dense<0.000000e+00> : vector<8x128xf32>
    %9 = vector.multi_reduction <add>, %8, %cst [0] : vector<2x8x128xf32> to vector<8x128xf32>
    %10 = arith.addf %7, %9 : vector<8x128xf32>
    %c0_6 = arith.constant 0 : index
    %c0_7 = arith.constant 0 : index
    %11 = vector.load %arg4[%c0_6, %c0_7] : memref<8x128xf32, #tpu.memory_space<vmem>>, vector<8x128xf32>
    tpu.vector_store %arg4[%c0_6, %c0_7], %10 {strides = array<i32>} : memref<8x128xf32, #tpu.memory_space<vmem>>, vector<8x128xf32>,
    return
  }
  func.func @transform_0(%arg0: i32, %arg1: i32) -> (i32, i32) {
    %c1_i32 = arith.constant 1 : i32
    %0 = arith.muli %arg0, %c1_i32 : i32
    %1 = arith.addi %0, %arg1 : i32
    %c0_i32 = arith.constant 0 : i32
    %c0_i32_0 = arith.constant 0 : i32
    return %1, %c0_i32 : i32, i32
  }
  func.func @transform_1(%arg0: i32, %arg1: i32) -> (i32, i32) {
    %c1_i32 = arith.constant 1 : i32
    %0 = arith.muli %arg0, %c1_i32 : i32
    %1 = arith.addi %0, %arg1 : i32
    %c0_i32 = arith.constant 0 : i32
    %c0_i32_0 = arith.constant 0 : i32
    return %1, %c0_i32 : i32, i32
  }
  func.func @transform_2(%arg0: i32, %arg1: i32) -> (i32, i32) {
    %c0_i32 = arith.constant 0 : i32
    %c0_i32_0 = arith.constant 0 : i32
    return %arg0, %c0_i32 : i32, i32
  }
}

</mosaic_0001>

<llo_original>
// kernel: tpu_custom_call.1
$region0: #{tpu_custom_call.1}
  #allocation0 [shape = 'u32[]', space=smem, size = 0x4, offset = 0x4, fixed_abs, tag = 'smem constant byte address 0x4 - core index']
  #allocation1 [shape = 'u32[144,128]{1,0:T(1,128)}', space=vmem, size = 0x12000, scoped, tag = 'internal scratch']
  %s0 = inlined_call_operand.hbm [shape: f32[16,128], index: 0, kind: input, shape index: {}]
  %s1 = inlined_call_operand.hbm [shape: f32[16,128], index: 1, kind: input, shape index: {}]
  %s2 = inlined_call_operand.hbm [shape: f32[8,128], index: 2, kind: output, shape index: {}]
  %s3 = sld [smem:[#allocation0]]
  $region30: #{tpu_custom_call.1} parent=0
    _
  %s5 = ssub.s32 1, %s3
  %s6 = scalar_select 0, %s5, %s3
  $region1: #{tpu_custom_call.1} parent=0
    #allocation2 [shape = 'u8[8192]{0}', space=vmem, size = 0x2000, scoped, tag = 'input window, operand 0, single buffered']
    #allocation3 [shape = 's32[1]{0}', space=sflag, size = 0x4, scoped, tag = 'scoped memory for tpu_custom_call.1']
    #allocation4 [shape = 's32[1]{0}', space=sflag, size = 0x4, scoped, tag = 'scoped memory for tpu_custom_call.1']
    #allocation5 [shape = 'u8[8192]{0}', space=vmem, size = 0x2000, scoped, tag = 'input window, operand 1, single buffered']
    #allocation6 [shape = 's32[1]{0}', space=sflag, size = 0x4, scoped, tag = 'scoped memory for tpu_custom_call.1']
    #allocation7 [shape = 'u8[4096]{0}', space=vmem, size = 0x1000, scoped, tag = 'output window, operand 0, single buffered']
    %7 = vsyncpa [#allocation3], 0
    %8 = vsyncpa [#allocation6], 0
    %9 = vsyncpa [#allocation4], 0
    // Predicated region
    $region2: #{tpu_custom_call.1} parent=1 // pred_check
      _
    $region3: #{tpu_custom_call.1} parent=1 // pred_check_branch
      %11 = sbr.rel (0) target = $region5
    $region4: #{tpu_custom_call.1} parent=1 // pred_region
      %s12 = sadd.s32 0, 0
      %s13 = smul.u32 2, %s12
      %s15 = ssub.s32 256, 256
      %16 = vsyncadd [#allocation3], %s15
      %s17 = smul.addr %s13, 128
      %s18 = scalar_lea.hbm %s0, %s17
      %s19 = sshll.u32 [#allocation2], 4
      %s20 = int_to_ptr.vmem [resolvable:$true] %s19
      %25 = dma.hbm_to_vmem [thread:$0]  %s18, 256, %s20, [#allocation3], 128, 128, 8
    $region5: #{tpu_custom_call.1} parent=1 // pred_fallthru
      _
    // Predicated region
    $region6: #{tpu_custom_call.1} parent=1 // pred_check
      _
    $region7: #{tpu_custom_call.1} parent=1 // pred_check_branch
      %27 = sbr.rel (0) target = $region9
    $region8: #{tpu_custom_call.1} parent=1 // pred_region
      %s28 = sadd.s32 0, 0
      %s29 = smul.u32 2, %s28
      %s31 = ssub.s32 256, 256
      %32 = vsyncadd [#allocation6], %s31
      %s33 = smul.addr %s29, 128
      %s34 = scalar_lea.hbm %s1, %s33
      %s35 = sshll.u32 [#allocation5], 4
      %s36 = int_to_ptr.vmem [resolvable:$true] %s35
      %41 = dma.hbm_to_vmem [thread:$0]  %s34, 256, %s36, [#allocation6], 128, 128, 8
    $region9: #{tpu_custom_call.1} parent=1 // pred_fallthru
      _
    // Predicated region
    $region10: #{tpu_custom_call.1} parent=1 // pred_check
      _
    $region11: #{tpu_custom_call.1} parent=1 // pred_check_branch
      %43 = sbr.rel (0) target = $region13
    $region12: #{tpu_custom_call.1} parent=1 // pred_region
      %44 = dma.done [#allocation3], 256
    $region13: #{tpu_custom_call.1} parent=1 // pred_fallthru
      _
    // Predicated region
    $region14: #{tpu_custom_call.1} parent=1 // pred_check
      _
    $region15: #{tpu_custom_call.1} parent=1 // pred_check_branch
      %46 = sbr.rel (0) target = $region17
    $region16: #{tpu_custom_call.1} parent=1 // pred_region
      %47 = dma.done [#allocation6], 256
    $region17: #{tpu_custom_call.1} parent=1 // pred_fallthru
      _
    %s48 = sadd.s32 0, 0
    %s49 = smul.u32 2, %s48
    %s50 = sadd.s32 0, 0
    %s51 = smul.u32 2, %s50
    %p52 = scmp.eq.s32.totalorder 0, 0
    // Predicated region
    $region18: #{tpu_custom_call.1} parent=1 // pred_check
      %p53 = pneg %p52
    $region19: #{tpu_custom_call.1} parent=1 // pred_check_branch
      %55 = sbr.rel (%p53) target = $region21
    $region20: #{tpu_custom_call.1} parent=1 // pred_region
      %56 = vst [vmem:[#allocation7] sm:$0xff] 0.0
    $region21: #{tpu_custom_call.1} parent=1 // pred_fallthru
      _
    %v57 = vld [vmem:[#allocation2] sm:$0xff]
    %v58 = vld [vmem:[#allocation2 + $0x8] sm:$0xff]
    %v59 = vld [vmem:[#allocation5] sm:$0xff]
    %v60 = vld [vmem:[#allocation5 + $0x8] sm:$0xff]
    %v61 = vsub.f32 %v57, %v59
    %v62 = vsub.f32 %v58, %v60
    %v63 = vmul.f32 %v61, %v61
    %v64 = vmul.f32 %v62, %v62
    %v65 = vld [vmem:[#allocation7] sm:$0xff]
    %v66 = vadd.f32 %v63, %v64
    %v67 = vadd.f32 %v65, %v66
    %68 = vst [vmem:[#allocation7] sm:$0xff] %v67
    // Predicated region
    $region22: #{tpu_custom_call.1} parent=1 // pred_check
      _
    $region23: #{tpu_custom_call.1} parent=1 // pred_check_branch
      %70 = sbr.rel (0) target = $region25
    $region24: #{tpu_custom_call.1} parent=1 // pred_region
      %s72 = ssub.s32 128, 128
      %73 = vsyncadd [#allocation4], %s72
      %s75 = sshll.u32 [#allocation7], 4
      %s76 = int_to_ptr.vmem [resolvable:$true] %s75
      %78 = dma.vmem_to_hbm [thread:$0]  %s76, 128, %s2, [#allocation4]
    $region25: #{tpu_custom_call.1} parent=1 // pred_fallthru
      _
    // Predicated region
    $region26: #{tpu_custom_call.1} parent=1 // pred_check
      _
    $region27: #{tpu_custom_call.1} parent=1 // pred_check_branch
      %80 = sbr.rel (0) target = $region29
    $region28: #{tpu_custom_call.1} parent=1 // pred_region
      %81 = dma.done [#allocation4], 128
    $region29: #{tpu_custom_call.1} parent=1 // pred_fallthru
      _
    %82 = vsyncpa [#allocation3], 1
    %83 = vsyncpa [#allocation6], 1
    %84 = vsyncpa [#allocation4], 1

</llo_original>
